<compile_context>
chip_gen: v5e
topology: v5e:2x2
jax: 0.10.0
libtpu: 0.0.40
codegen_flags: <defaults>
</compile_context>

<pallas_src>
import functools

import jax
import jax.numpy as jnp
from jax.experimental import pallas as pl
from jax.experimental.pallas import tpu as pltpu

GAMMA = 2.0  # matches FocalLoss(gamma=2)
# TODO(synk): alpha (class-weighting) path not implemented; matches alpha=None only.


def _tpu_hw():
    """(vmem_capacity_bytes, tensorcores_per_chip, bf16_vpu) with safe fallbacks."""
    vmem = 128 * 1024 * 1024
    try:
        info = pltpu.get_tpu_info()
        vmem = int(getattr(info, "vmem_capacity_bytes", vmem))
    except Exception:
        pass
    kind = ""
    try:
        kind = jax.devices()[0].device_kind.lower()
    except Exception:
        pass
    is_v7 = ("v7" in kind) or (vmem <= 64 * 1024 * 1024)
    num_cores = 2 if is_v7 else 1                 # v7x: 2 TCs/chip; v5e/v6e: 1
    bf16_vpu = not any(g in kind for g in ("v2", "v3", "v4", "v5"))
    return vmem, num_cores, bf16_vpu


def _pick_tile_rows(n_rows, n_classes, in_itemsize, vmem_capacity_bytes):
    """Largest multiple-of-8 row tile whose estimated VMEM footprint fits."""
    lane_c = max(128, ((n_classes + 127) // 128) * 128)   # lanes pad to 128
    # ~45% of per-core VMEM: ~56 MiB on 128 MiB v5e/v6e, ~28 MiB on 64 MiB v7x.
    budget = min(int(vmem_capacity_bytes * 0.45), 56 * 1024 * 1024)
    per_row = (2 * lane_c * in_itemsize     # double-buffered logits input block
               + 3 * lane_c * 4             # f32 slab temporaries (select / exp)
               + 8 * 128 * 4)               # lane-padded (TR,1) temps, acc, targets
    tr = budget // per_row
    tr = min(tr, 8192)                      # blocks are >=2 MiB well before this
    tr = min(tr, -(-n_rows // 8) * 8)
    tr = max(8, (tr // 8) * 8)
    return int(tr)


def _focal_loss_kernel(logits_ref, target_ref, out_ref, acc_ref, *,
                       gamma, n_valid_rows, tile_rows, tiles_per_core,
                       allow_bf16_compute):
    c = pl.program_id(0)   # core split (parallel; size 1 on single-TC chips)
    i = pl.program_id(1)   # row-tile walk (arbitrary / reduction)

    @pl.when(i == 0)
    def _init():
        acc_ref[...] = jnp.zeros_like(acc_ref)

    x_in = logits_ref[...]                       # (TR, C), input dtype
    t = target_ref[...]                          # (TR, 1) int32

    if allow_bf16_compute and x_in.dtype == jnp.bfloat16:
        x = x_in                                 # bf16 compare/select/max (exact)
    else:
        x = x_in.astype(jnp.float32)

    # Row-wise log-sum-exp over the class (lane) axis.  The max and the one-hot
    # gather are pure selects of existing values (exact in either dtype); only
    # (x - m) is upcast immediately before exp.
    m = jnp.max(x, axis=-1, keepdims=True)                                # (TR,1)
    ex = jnp.exp((x - m).astype(jnp.float32))                             # (TR,C) f32
    lse = jnp.log(jnp.sum(ex, axis=-1, keepdims=True)) + m.astype(jnp.float32)

    # Gather the target logit directly (no full (TR, C) log-softmax temp).
    cls_iota = jax.lax.broadcasted_iota(jnp.int32, x.shape, 1)
    x_t = jnp.sum(jnp.where(cls_iota == t, x, jnp.zeros_like(x)),
                  axis=-1, keepdims=True).astype(jnp.float32)             # (TR,1)

    logpt = x_t - lse                            # log p_t
    pt = jnp.exp(logpt)
    w = 1.0 - pt

    if gamma == 2:                               # default: plain square on the VPU
        focal = w * w
    elif float(gamma) == int(gamma) and gamma >= 0:
        focal = jnp.ones_like(w)
        for _ in range(int(gamma)):
            focal = focal * w
    else:
        focal = jnp.power(jnp.maximum(w, 0.0), gamma)

    loss = -focal * logpt                        # (TR, 1)

    # Tail masking only where it can matter: rows past the real N (partial last
    # block or clamped overrun step) contribute 0.  Interior tiles skip the
    # iota/compare/select entirely.  NOTE: this must stay a select (jnp.where),
    # not a multiply -- out-of-bounds rows may hold NaN/Inf.
    row0 = (c * tiles_per_core + i) * tile_rows
    is_interior = row0 + tile_rows <= n_valid_rows

    @pl.when(is_interior)
    def _accumulate_fast():
        acc_ref[...] += loss

    @pl.when(jnp.logical_not(is_interior))
    def _accumulate_tail():
        row_ids = row0 + jax.lax.broadcasted_iota(jnp.int32, loss.shape, 0)
        acc_ref[...] += jnp.where(row_ids < n_valid_rows, loss, 0.0)

    @pl.when(i == pl.num_programs(1) - 1)
    def _finalize():
        out_ref[...] = jnp.broadcast_to(jnp.sum(acc_ref[...]), out_ref.shape)


def focal_loss(logits, target, *, gamma=GAMMA, size_average=True, tile_rows=None):
    """logits: (B, L, C) float (f32 or bf16); target: (B, L) int. Returns scalar."""
    B, L, C = logits.shape
    N = B * L
    x = logits.reshape(N, C)
    t = target.reshape(N, 1).astype(jnp.int32)

    vmem_cap, num_cores_hw, bf16_vpu = _tpu_hw()

    n_rows = N
    if n_rows < 8:  # tiny-N corner: pad rows so the block meets the (8, _) rule
        pad = 8 - n_rows
        x = jnp.pad(x, ((0, pad), (0, 0)))
        t = jnp.pad(t, ((0, pad), (0, 0)))
        n_rows = 8

    itemsize = jnp.dtype(x.dtype).itemsize
    if tile_rows is None:
        tile_rows = _pick_tile_rows(n_rows, C, itemsize, vmem_cap)
    n_rows_8 = -(-n_rows // 8) * 8
    tile_rows = max(8, min(int(tile_rows), n_rows_8))
    tile_rows = (tile_rows // 8) * 8

    total_tiles = -(-n_rows // tile_rows)
    num_cores = num_cores_hw if total_tiles >= 2 else 1
    tiles_per_core = -(-total_tiles // num_cores)

    kernel = functools.partial(
        _focal_loss_kernel,
        gamma=gamma,
        n_valid_rows=N,
        tile_rows=tile_rows,
        tiles_per_core=tiles_per_core,
        allow_bf16_compute=bf16_vpu,
    )

    if num_cores * tiles_per_core > total_tiles:
        # Last core's overrun step re-reads a valid block; its rows are masked
        # to zero inside the kernel.
        def row_block_map(c_idx, i_idx):
            return (jnp.minimum(c_idx * tiles_per_core + i_idx, total_tiles - 1), 0)
    else:
        def row_block_map(c_idx, i_idx):
            return (c_idx * tiles_per_core + i_idx, 0)

    # Generation-aware scoped-VMEM limit: ~96 MiB on 128 MiB chips, ~48 MiB on
    # 64 MiB v7x (the tile budget above stays well inside this).
    vmem_limit = min(int(vmem_cap * 0.75), 100 * 1024 * 1024)

    cost = pl.CostEstimate(
        flops=6 * N * C,
        transcendentals=N * C + 2 * N,
        bytes_accessed=N * C * itemsize + 4 * N + num_cores * 8 * 128 * 4,
    )

    out = pl.pallas_call(
        kernel,
        out_shape=jax.ShapeDtypeStruct((num_cores, 8, 128), jnp.float32),
        grid_spec=pltpu.PrefetchScalarGridSpec(
            num_scalar_prefetch=0,
            grid=(num_cores, tiles_per_core),
            in_specs=[
                pl.BlockSpec((tile_rows, C), row_block_map),
                # TODO(synk): targets land in a lane-padded (TR,128) tile with a
                # sublane-strided DMA; repack as (N/8, 8) only if xprof shows it
                # on the critical path.
                pl.BlockSpec((tile_rows, 1), row_block_map),
            ],
            out_specs=pl.BlockSpec((1, 8, 128), lambda c_idx, i_idx: (c_idx, 0, 0)),
            scratch_shapes=[pltpu.VMEM((tile_rows, 1), jnp.float32)],
        ),
        compiler_params=pltpu.CompilerParams(
            # TODO(synk): on v7x, if xprof shows one TensorCore idle, switch the
            # leading axis to pltpu.CORE_PARALLEL (or pl.core_map over a
            # tensorcore mesh) instead of "parallel".
            dimension_semantics=("parallel", "arbitrary"),
            vmem_limit_bytes=vmem_limit,
        ),
        cost_estimate=cost,
    )(x, t)

    total = jnp.sum(out[:, 0, 0])                  # per-core partial sums
    if size_average:
        return total / jnp.float32(N)
    return total


def _reference(logits, target, gamma=GAMMA, size_average=True):
    N = logits.shape[0] * logits.shape[1]
    C = logits.shape[-1]
    x = logits.reshape(N, C).astype(jnp.float32)
    t = target.reshape(N).astype(jnp.int32)
    logsm = jax.nn.log_softmax(x, axis=-1)
    logpt = jnp.take_along_axis(logsm, t[:, None], axis=1)[:, 0]
    pt = jnp.exp(logpt)
    loss = -1.0 * (1.0 - pt) ** gamma * logpt
    return loss.mean() if size_average else loss.sum()


if __name__ == "__main__":
    key = jax.random.PRNGKey(0)
    k1, k2, k3, k4 = jax.random.split(key, 4)

    # Small shapes consistent with the module: (B, L, C) logits, (B, L) targets.
    B, L, C = 2, 8, 32
    logits = jax.random.normal(k1, (B, L, C), dtype=jnp.float32)
    target = jax.random.randint(k2, (B, L), 0, C, dtype=jnp.int32)

    ref_mean = _reference(logits, target)
    ref_sum = _reference(logits, target, size_average=False)

    # Auto-sized tile (single tile / single core for this tiny demo).
    loss = focal_loss(logits, target)
    jax.block_until_ready(loss)
    assert jnp.allclose(loss, ref_mean, rtol=1e-5, atol=1e-5), (loss, ref_mean)

    # Force multiple tiles -> exercises the multi-step accumulator everywhere
    # and the 2-way core split + clamped overrun step on v7x.
    loss_tiled = focal_loss(logits, target, tile_rows=8)
    jax.block_until_ready(loss_tiled)
    assert jnp.allclose(loss_tiled, ref_mean, rtol=1e-5, atol=1e-5), (loss_tiled, ref_mean)

    # size_average=False (sum reduction) path.
    loss_sum = focal_loss(logits, target, size_average=False)
    jax.block_until_ready(loss_sum)
    assert jnp.allclose(loss_sum, ref_sum, rtol=1e-5, atol=1e-5), (loss_sum, ref_sum)

    # Odd shapes (N=21 rows, C=33 classes): exercises the pl.when-gated tail
    # mask on a partial last block.
    B2, L2, C2 = 3, 7, 33
    logits2 = jax.random.normal(k3, (B2, L2, C2), dtype=jnp.float32)
    target2 = jax.random.randint(k4, (B2, L2), 0, C2, dtype=jnp.int32)
    ref2 = _reference(logits2, target2)
    loss2 = focal_loss(logits2, target2, tile_rows=8)
    jax.block_until_ready(loss2)
    assert jnp.allclose(loss2, ref2, rtol=1e-5, atol=1e-5), (loss2, ref2)

    # bf16 fast path (v6e/v7x; falls back to f32 compute on v5e).  Compare vs.
    # the f32 reference on the bf16-cast logits with a loose tolerance.
    logits_bf16 = logits.astype(jnp.bfloat16)
    ref_bf16 = _reference(logits_bf16.astype(jnp.float32), target)
    loss_bf16 = focal_loss(logits_bf16, target)
    jax.block_until_ready(loss_bf16)
    assert jnp.allclose(loss_bf16, ref_bf16, rtol=5e-2, atol=5e-2), (loss_bf16, ref_bf16)

    print("KERNEL_OK")
</pallas_src>

<mosaic_0001>
module attributes {stable_mosaic.version = 11 : i64} {
  func.func @_focal_loss_kernel(%arg0: i32, %arg1: i32, %arg2: memref<16x32xf32, #tpu.memory_space<vmem>>, %arg3: memref<16x1xi32, #tpu.memory_space<vmem>>, %arg4: memref<1x8x128xf32, #tpu.memory_space<vmem>>, %arg5: memref<16x1xf32, #tpu.memory_space<vmem>>) attributes {dimension_semantics = [#tpu.dimension_semantics<parallel>, #tpu.dimension_semantics<arbitrary>], iteration_bounds = array<i64: 1, 1>, scalar_prefetch = 0 : i64, scratch_operands = 1 : i64, tpu.core_type = #tpu.core_type<tc>, window_params = [{transform_indices = @transform_0, window_bounds = array<i64: 16, 32>}, {transform_indices = @transform_1, window_bounds = array<i64: 16, 1>}, {transform_indices = @transform_2, window_bounds = array<i64: 1, 8, 128>}]} {
    %c0_i32 = arith.constant 0 : i32
    %0 = arith.cmpi eq, %arg1, %c0_i32 : i32
    %1 = arith.extui %0 : i1 to i32
    %c0_i32_0 = arith.constant 0 : i32
    %2 = arith.cmpi ne, %1, %c0_i32_0 : i32
    scf.if %2 {
      %cst_15 = arith.constant 0.000000e+00 : f32
      %42 = vector.broadcast %cst_15 : f32 to vector<16x1xf32>
      %c0_16 = arith.constant 0 : index
      %c0_17 = arith.constant 0 : index
      %43 = vector.load %arg5[%c0_16, %c0_17] : memref<16x1xf32, #tpu.memory_space<vmem>>, vector<16x1xf32>
      tpu.vector_store %arg5[%c0_16, %c0_17], %42 {strides = array<i32>} : memref<16x1xf32, #tpu.memory_space<vmem>>, vector<16x1xf32>,
    } else {
    }
    %c0 = arith.constant 0 : index
    %c0_1 = arith.constant 0 : index
    %3 = vector.load %arg2[%c0, %c0_1] : memref<16x32xf32, #tpu.memory_space<vmem>>, vector<16x32xf32>
    %c0_2 = arith.constant 0 : index
    %c0_3 = arith.constant 0 : index
    %4 = vector.load %arg3[%c0_2, %c0_3] : memref<16x1xi32, #tpu.memory_space<vmem>>, vector<16x1xi32>
    %cst = arith.constant dense<0xFF800000> : vector<16xf32>
    %5 = vector.multi_reduction <maximumf>, %3, %cst [1] : vector<16x32xf32> to vector<16xf32>
    %6 = vector.shape_cast %5 : vector<16xf32> to vector<16x1xf32>
    %7 = vector.broadcast %6 : vector<16x1xf32> to vector<16x32xf32>
    %8 = arith.subf %3, %7 : vector<16x32xf32>
    %9 = math.exp %8 : vector<16x32xf32>
    %cst_4 = arith.constant dense<0.000000e+00> : vector<16xf32>
    %10 = vector.multi_reduction <add>, %9, %cst_4 [1] : vector<16x32xf32> to vector<16xf32>
    %11 = vector.shape_cast %10 : vector<16xf32> to vector<16x1xf32>
    %12 = math.log %11 : vector<16x1xf32>
    %13 = arith.addf %12, %6 : vector<16x1xf32>
    %14 = tpu.iota {dimensions = array<i32: 1>} : vector<16x32xi32>
    %15 = vector.broadcast %4 : vector<16x1xi32> to vector<16x32xi32>
    %16 = arith.cmpi eq, %14, %15 : vector<16x32xi32>
    %cst_5 = arith.constant 0.000000e+00 : f32
    %17 = vector.broadcast %cst_5 : f32 to vector<16x32xf32>
    %18 = arith.select %16, %3, %17 : vector<16x32xi1>, vector<16x32xf32>
    %cst_6 = arith.constant dense<0.000000e+00> : vector<16xf32>
    %19 = vector.multi_reduction <add>, %18, %cst_6 [1] : vector<16x32xf32> to vector<16xf32>
    %20 = vector.shape_cast %19 : vector<16xf32> to vector<16x1xf32>
    %21 = arith.subf %20, %13 : vector<16x1xf32>
    %22 = math.exp %21 : vector<16x1xf32>
    %cst_7 = arith.constant 1.000000e+00 : f32
    %23 = vector.broadcast %cst_7 : f32 to vector<16x1xf32>
    %24 = arith.subf %23, %22 : vector<16x1xf32>
    %25 = arith.mulf %24, %24 : vector<16x1xf32>
    %cst_8 = arith.constant 0.000000e+00 : f32
    %26 = vector.broadcast %cst_8 : f32 to vector<16x1xf32>
    %27 = arith.subf %26, %25 : vector<16x1xf32>
    %28 = arith.mulf %27, %21 : vector<16x1xf32>
    %c1_i32 = arith.constant 1 : i32
    %29 = arith.muli %arg0, %c1_i32 : i32
    %30 = arith.addi %29, %arg1 : i32
    %c16_i32 = arith.constant 16 : i32
    %31 = arith.muli %30, %c16_i32 : i32
    %c16_i32_9 = arith.constant 16 : i32
    %32 = arith.addi %31, %c16_i32_9 : i32
    %c16_i32_10 = arith.constant 16 : i32
    %33 = arith.cmpi sle, %32, %c16_i32_10 : i32
    %34 = arith.extui %33 : i1 to i32
    %c0_i32_11 = arith.constant 0 : i32
    %35 = arith.cmpi ne, %34, %c0_i32_11 : i32
    scf.if %35 {
      %c0_15 = arith.constant 0 : index
      %c0_16 = arith.constant 0 : index
      %42 = vector.load %arg5[%c0_15, %c0_16] : memref<16x1xf32, #tpu.memory_space<vmem>>, vector<16x1xf32>
      %43 = arith.addf %42, %28 : vector<16x1xf32>
      %c0_17 = arith.constant 0 : index
      %c0_18 = arith.constant 0 : index
      %44 = vector.load %arg5[%c0_17, %c0_18] : memref<16x1xf32, #tpu.memory_space<vmem>>, vector<16x1xf32>
      tpu.vector_store %arg5[%c0_17, %c0_18], %43 {strides = array<i32>} : memref<16x1xf32, #tpu.memory_space<vmem>>, vector<16x1xf32>,
    } else {
    }
    %true = arith.constant true
    %36 = arith.xori %33, %true : i1
    %37 = arith.extui %36 : i1 to i32
    %c0_i32_12 = arith.constant 0 : i32
    %38 = arith.cmpi ne, %37, %c0_i32_12 : i32
    scf.if %38 {
      %42 = tpu.iota {dimensions = array<i32: 0>} : vector<16x1xi32>
      %43 = vector.broadcast %31 : i32 to vector<16x1xi32>
      %44 = arith.addi %43, %42 : vector<16x1xi32>
      %c0_15 = arith.constant 0 : index
      %c0_16 = arith.constant 0 : index
      %45 = vector.load %arg5[%c0_15, %c0_16] : memref<16x1xf32, #tpu.memory_space<vmem>>, vector<16x1xf32>
      %c16_i32_17 = arith.constant 16 : i32
      %46 = vector.broadcast %c16_i32_17 : i32 to vector<16x1xi32>
      %47 = arith.cmpi slt, %44, %46 : vector<16x1xi32>
      %cst_18 = arith.constant 0.000000e+00 : f32
      %48 = vector.broadcast %cst_18 : f32 to vector<16x1xf32>
      %49 = arith.select %47, %28, %48 : vector<16x1xi1>, vector<16x1xf32>
      %50 = arith.addf %45, %49 : vector<16x1xf32>
      %c0_19 = arith.constant 0 : index
      %c0_20 = arith.constant 0 : index
      %51 = vector.load %arg5[%c0_19, %c0_20] : memref<16x1xf32, #tpu.memory_space<vmem>>, vector<16x1xf32>
      tpu.vector_store %arg5[%c0_19, %c0_20], %50 {strides = array<i32>} : memref<16x1xf32, #tpu.memory_space<vmem>>, vector<16x1xf32>,
    } else {
    }
    %c0_i32_13 = arith.constant 0 : i32
    %39 = arith.cmpi eq, %arg1, %c0_i32_13 : i32
    %40 = arith.extui %39 : i1 to i32
    %c0_i32_14 = arith.constant 0 : i32
    %41 = arith.cmpi ne, %40, %c0_i32_14 : i32
    scf.if %41 {
      %c0_15 = arith.constant 0 : index
      %c0_16 = arith.constant 0 : index
      %42 = vector.load %arg5[%c0_15, %c0_16] : memref<16x1xf32, #tpu.memory_space<vmem>>, vector<16x1xf32>
      %43 = vector.shape_cast %42 : vector<16x1xf32> to vector<1x16x1xf32>
      %cst_17 = arith.constant dense<0.000000e+00> : vector<1xf32>
      %44 = vector.multi_reduction <add>, %43, %cst_17 [1, 2] : vector<1x16x1xf32> to vector<1xf32>
      %45 = vector.shape_cast %44 : vector<1xf32> to vector<1x1x1xf32>
      %46 = vector.extract %45[0, 0, 0] : f32 from vector<1x1x1xf32>
      %47 = vector.broadcast %46 : f32 to vector<1x8x128xf32>
      %c0_18 = arith.constant 0 : index
      %c0_19 = arith.constant 0 : index
      %c0_20 = arith.constant 0 : index
      %48 = vector.load %arg4[%c0_18, %c0_19, %c0_20] : memref<1x8x128xf32, #tpu.memory_space<vmem>>, vector<1x8x128xf32>
      tpu.vector_store %arg4[%c0_18, %c0_19, %c0_20], %47 {strides = array<i32>} : memref<1x8x128xf32, #tpu.memory_space<vmem>>, vector<1x8x128xf32>,
    } else {
    }
    return
  }
  func.func @transform_0(%arg0: i32, %arg1: i32) -> (i32, i32) {
    %c1_i32 = arith.constant 1 : i32
    %0 = arith.muli %arg0, %c1_i32 : i32
    %1 = arith.addi %0, %arg1 : i32
    %c0_i32 = arith.constant 0 : i32
    %c0_i32_0 = arith.constant 0 : i32
    return %1, %c0_i32 : i32, i32
  }
  func.func @transform_1(%arg0: i32, %arg1: i32) -> (i32, i32) {
    %c1_i32 = arith.constant 1 : i32
    %0 = arith.muli %arg0, %c1_i32 : i32
    %1 = arith.addi %0, %arg1 : i32
    %c0_i32 = arith.constant 0 : i32
    %c0_i32_0 = arith.constant 0 : i32
    return %1, %c0_i32 : i32, i32
  }
  func.func @transform_2(%arg0: i32, %arg1: i32) -> (i32, i32, i32) {
    %c0_i32 = arith.constant 0 : i32
    %c0_i32_0 = arith.constant 0 : i32
    %c0_i32_1 = arith.constant 0 : i32
    return %arg0, %c0_i32, %c0_i32_0 : i32, i32, i32
  }
}

</mosaic_0001>

<llo_original>
// kernel: tpu_custom_call.1
$region0: #{tpu_custom_call.1}
  #allocation0 [shape = 'u32[]', space=smem, size = 0x4, offset = 0x4, fixed_abs, tag = 'smem constant byte address 0x4 - core index']
  #allocation1 [shape = 'u32[72,128]{1,0:T(1,128)}', space=vmem, size = 0x9000, scoped, tag = 'internal scratch']
  #allocation2 [shape = 'f32[16,1]{1,0:T(8,128)}', space=vmem, size = 0x2000, scoped, tag = 'scratch operand']
  %s0 = inlined_call_operand.vmem [shape: f32[16,32], index: 0, kind: input, shape index: {}]
  %s1 = inlined_call_operand.vmem [shape: s32[16,1], index: 1, kind: input, shape index: {}]
  %s2 = inlined_call_operand.hbm [shape: f32[1,8,128], index: 2, kind: output, shape index: {}]
  %s3 = sld [smem:[#allocation0]]
  $region34: #{tpu_custom_call.1} parent=0
    _
  %s5 = ssub.s32 1, %s3
  %s6 = scalar_select 0, %s5, %s3
  $region1: #{tpu_custom_call.1} parent=0
    #allocation3 [shape = 'u8[4096]{0}', space=vmem, size = 0x1000, scoped, tag = 'output window, operand 0, single buffered']
    #allocation4 [shape = 's32[1]{0}', space=sflag, size = 0x4, scoped, tag = 'scoped memory for tpu_custom_call.1']
    %7 = vsyncpa [#allocation4], 0
    // Predicated region
    $region2: #{tpu_custom_call.1} parent=1 // pred_check
      _
    $region3: #{tpu_custom_call.1} parent=1 // pred_check_branch
      %9 = sbr.rel (0) target = $region5
    $region4: #{tpu_custom_call.1} parent=1 // pred_region
      %s10 = sadd.s32 0, 0
      %s11 = smul.u32 2, %s10
      %p12 = scmp.lt.s32.totalorder %s11, 1
      %s13 = scalar_select %p12, %s11, 1
      %s14 = smul.addr %s13, 8
      %s15 = scalar_lea.vmem %s0, %s14
      %s16 = sadd.s32 0, 0
      %s17 = smul.u32 2, %s16
    $region5: #{tpu_custom_call.1} parent=1 // pred_fallthru
      _
    // Predicated region
    $region6: #{tpu_custom_call.1} parent=1 // pred_check
      _
    $region7: #{tpu_custom_call.1} parent=1 // pred_check_branch
      %19 = sbr.rel (0) target = $region9
    $region8: #{tpu_custom_call.1} parent=1 // pred_region
      %s20 = sadd.s32 0, 0
      %s21 = smul.u32 2, %s20
      %p22 = scmp.lt.s32.totalorder %s21, 1
      %s23 = scalar_select %p22, %s21, 1
      %s24 = smul.addr %s23, 8
      %s25 = scalar_lea.vmem %s1, %s24
      %s26 = sadd.s32 0, 0
      %s27 = smul.u32 2, %s26
    $region9: #{tpu_custom_call.1} parent=1 // pred_fallthru
      _
    %s28 = sadd.s32 0, 0
    %s29 = smul.u32 2, %s28
    %p30 = scmp.lt.s32.totalorder %s29, 1
    %s31 = scalar_select %p30, %s29, 1
    %s32 = smul.addr %s31, 8
    %s33 = scalar_lea.vmem %s0, %s32
    %s34 = sadd.s32 0, 0
    %s35 = smul.u32 2, %s34
    %p36 = scmp.lt.s32.totalorder %s35, 1
    %s37 = scalar_select %p36, %s35, 1
    %s38 = smul.addr %s37, 8
    %s39 = scalar_lea.vmem %s1, %s38
    %s40 = sadd.s32 0, 0
    %s41 = smul.u32 2, %s40
    %p42 = scmp.lt.s32.totalorder %s41, 1
    %s43 = scalar_select %p42, %s41, 1
    %s44 = smul.addr %s43, 8
    %s45 = scalar_lea.vmem %s0, %s44
    %s46 = sadd.s32 0, 0
    %s47 = smul.u32 2, %s46
    %s48 = sadd.s32 0, 0
    %s49 = smul.u32 2, %s48
    %p50 = scmp.lt.s32.totalorder %s49, 1
    %s51 = scalar_select %p50, %s49, 1
    %s52 = smul.addr %s51, 8
    %s53 = scalar_lea.vmem %s1, %s52
    %s54 = sadd.s32 0, 0
    %s55 = smul.u32 2, %s54
    %p56 = scmp.eq.s32.totalorder 0, 0
    // Predicated region
    $region10: #{tpu_custom_call.1} parent=1 // pred_check
      %p57 = pneg %p56
    $region11: #{tpu_custom_call.1} parent=1 // pred_check_branch
      %59 = sbr.rel (%p57) target = $region13
    $region12: #{tpu_custom_call.1} parent=1 // pred_region
      %vm60 = vcmask 7168
      %61 = vst.msk [vmem:[#allocation2] sm:$0xff] %vm60, 0.0
      %62 = vst.msk [vmem:[#allocation2 + $0x8] sm:$0xff] %vm60, 0.0
    $region13: #{tpu_custom_call.1} parent=1 // pred_fallthru
      _
    %v63 = vld [vmem:[%s45] sm:$0xff]
    %v64 = vld [vmem:[%s45 + $0x8] sm:$0xff]
    %v65 = vld [vmem:[%s53] sm:$0xff]
    %v66 = vld [vmem:[%s53 + $0x8] sm:$0xff]
    %vm67 = vcmask 261120
    %v68 = vsel %vm67, %v63, -inf
    %69 = vmax.xlane.f32.xlu0 %v68
    %v70 = vpop.xlane.xlu0 %69
    %v71 = vsel %vm67, %v64, -inf
    %72 = vmax.xlane.f32.xlu0 %v71
    %v73 = vpop.xlane.xlu0 %72
    %v74 = vsub.f32 %v63, %v70
    %v75 = vsub.f32 %v64, %v73
    %v76 = vmul.f32 %v74, 1.442695
    %v77 = vpow.pop %v76
    %v78 = vmul.f32 %v75, 1.442695
    %v79 = vpow.pop %v78
    %v80 = vsel %vm67, %v77, 0.0
    %81 = vadd.xlane.f32.xlu0 %v80
    %v82 = vpop.xlane.xlu0 %81
    %v83 = vsel %vm67, %v79, 0.0
    %84 = vadd.xlane.f32.xlu0 %v83
    %v85 = vpop.xlane.xlu0 %84
    %v86 = vlog2.pop %v82
    %v87 = vmul.f32 %v86, 0.6931472
    %v88 = vlog2.pop %v85
    %v89 = vmul.f32 %v88, 0.6931472
    %v90 = vadd.f32 %v87, %v70
    %v91 = vadd.f32 %v89, %v73
    %v92 = vlaneseq
    %v93 = vand.u32 %v92, 127
    %94 = vset.pattern.permute.xlu0 0
    %95 = vperm.xlu0 %94, %v65
    %v96 = vpop.permute.xlu0 %95
    %97 = vset.pattern.permute.xlu0 0
    %98 = vperm.xlu0 %97, %v66
    %v99 = vpop.permute.xlu0 %98
    %vm100 = vcmp.eq.s32.totalorder %v93, %v96
    %vm101 = vcmp.eq.s32.totalorder %v93, %v99
    %v102 = vsel %vm100, %v63, 0.0
    %v103 = vsel %vm101, %v64, 0.0
    %v104 = vsel %vm67, %v102, 0.0
    %105 = vadd.xlane.f32.xlu0 %v104
    %v106 = vpop.xlane.xlu0 %105
    %v107 = vsel %vm67, %v103, 0.0
    %108 = vadd.xlane.f32.xlu0 %v107
    %v109 = vpop.xlane.xlu0 %108
    %v110 = vsub.f32 %v106, %v90
    %v111 = vsub.f32 %v109, %v91
    %v112 = vmul.f32 %v110, 1.442695
    %v113 = vpow.pop %v112
    %v114 = vmul.f32 %v111, 1.442695
    %v115 = vpow.pop %v114
    %v116 = vsub.f32 1.0, %v113
    %v117 = vsub.f32 1.0, %v115
    %v118 = vmul.f32 %v116, %v116
    %v119 = vmul.f32 %v117, %v117
    %v120 = vsub.f32 0.0, %v118
    %v121 = vsub.f32 0.0, %v119
    %v122 = vmul.f32 %v120, %v110
    %v123 = vmul.f32 %v121, %v111
    %s124 = sadd.s32 0, 0
    %s125 = smul.u32 %s124, 16
    %s126 = sadd.s32 %s125, 16
    %p127 = scmp.le.s32.totalorder %s126, 16
    // Predicated region
    $region14: #{tpu_custom_call.1} parent=1 // pred_check
      %p128 = pneg %p127
    $region15: #{tpu_custom_call.1} parent=1 // pred_check_branch
      %130 = sbr.rel (%p128) target = $region17
    $region16: #{tpu_custom_call.1} parent=1 // pred_region
      %v131 = vld [vmem:[#allocation2] sm:$0xff]
      %v132 = vld [vmem:[#allocation2 + $0x8] sm:$0xff]
      %v133 = vadd.f32 %v131, %v122
      %v134 = vadd.f32 %v132, %v123
      %vm135 = vcmask 7168
      %136 = vst.msk [vmem:[#allocation2] sm:$0xff] %vm135, %v133
      %137 = vst.msk [vmem:[#allocation2 + $0x8] sm:$0xff] %vm135, %v134
    $region17: #{tpu_custom_call.1} parent=1 // pred_fallthru
      _
    %p138 = scmp.gt.s32.totalorder %s126, 16
    // Predicated region
    $region18: #{tpu_custom_call.1} parent=1 // pred_check
      %p139 = pneg %p138
    $region19: #{tpu_custom_call.1} parent=1 // pred_check_branch
      %141 = sbr.rel (%p139) target = $region21
    $region20: #{tpu_custom_call.1} parent=1 // pred_region
      %v142 = vlaneseq
      %v143 = vshrl.u32 %v142, 7
      %v144 = vadd.s32 %v143, 8
      %v145 = vstv %s125
      %v146 = vadd.s32 %v145, %v143
      %v147 = vadd.s32 %v145, %v144
      %v148 = vld [vmem:[#allocation2] sm:$0xff]
      %v149 = vld [vmem:[#allocation2 + $0x8] sm:$0xff]
      %vm150 = vcmp.lt.s32.totalorder %v146, 16
      %vm151 = vcmp.lt.s32.totalorder %v147, 16
      %v152 = vsel %vm150, %v122, 0.0
      %v153 = vsel %vm151, %v123, 0.0
      %v154 = vadd.f32 %v148, %v152
      %v155 = vadd.f32 %v149, %v153
      %vm156 = vcmask 7168
      %157 = vst.msk [vmem:[#allocation2] sm:$0xff] %vm156, %v154
      %158 = vst.msk [vmem:[#allocation2 + $0x8] sm:$0xff] %vm156, %v155
    $region21: #{tpu_custom_call.1} parent=1 // pred_fallthru
      _
    // Predicated region
    $region22: #{tpu_custom_call.1} parent=1 // pred_check
      %p159 = pneg %p56
    $region23: #{tpu_custom_call.1} parent=1 // pred_check_branch
      %161 = sbr.rel (%p159) target = $region25
    $region24: #{tpu_custom_call.1} parent=1 // pred_region
      %v162 = vld [vmem:[#allocation2] sm:$0xff]
      %v163 = vld [vmem:[#allocation2 + $0x8] sm:$0xff]
      %vm164 = vcmask 7168
      %v165 = vsel %vm164, %v162, 0.0
      %v166 = vsel %vm164, %v163, 0.0
      %v167 = vadd.f32 %v165, %v166
      %168 = vadd.xlane.f32.xlu0 %v167
      %v169 = vpop.xlane.xlu0 %168
      %v170 = vrot.slane %v169, 4
      %v171 = vadd.f32 %v169, %v170
      %v172 = vrot.slane %v171, 2
      %v173 = vadd.f32 %v171, %v172
      %v174 = vrot.slane %v173, 1
      %v175 = vadd.f32 %v173, %v174
      %s176 = vtos %v175
      %v177 = vstv %s176
      %178 = vst [vmem:[#allocation3] sm:$0xff] %v177
    $region25: #{tpu_custom_call.1} parent=1 // pred_fallthru
      _
    // Predicated region
    $region26: #{tpu_custom_call.1} parent=1 // pred_check
      _
    $region27: #{tpu_custom_call.1} parent=1 // pred_check_branch
      %180 = sbr.rel (0) target = $region29
    $region28: #{tpu_custom_call.1} parent=1 // pred_region
      %182 = vsyncadd [#allocation4], 0
      %s184 = sshll.u32 [#allocation3], 4
      %s185 = int_to_ptr.vmem [resolvable:$true] %s184
      %s186 = sshll.u32 %s2, 4
      %s187 = int_to_ptr.hbm [resolvable:$true] %s186
      %189 = dma.vmem_to_hbm [thread:$0]  %s185, 128, %s187, [#allocation4]
    $region29: #{tpu_custom_call.1} parent=1 // pred_fallthru
      _
    // Predicated region
    $region30: #{tpu_custom_call.1} parent=1 // pred_check
      _
    $region31: #{tpu_custom_call.1} parent=1 // pred_check_branch
      %191 = sbr.rel (0) target = $region33
    $region32: #{tpu_custom_call.1} parent=1 // pred_region
      %193 = dma.done [#allocation4], 128
    $region33: #{tpu_custom_call.1} parent=1 // pred_fallthru
      _
    %194 = vsyncpa [#allocation4], 1

</llo_original>
